<compile_context>
chip_gen: v7x
topology: tpu7x:2x2x1
jax: 0.10.0
libtpu: 0.0.40
codegen_flags: <defaults>
</compile_context>

<pallas_src>
import functools
import math

import jax
import jax.numpy as jnp
from jax.experimental import pallas as pl
from jax.experimental.pallas import tpu as pltpu


def _normalization_kernel(x_ref, o_ref, *, mul, add):
    # Elementwise hot path: cast to f32, then one multiply-add.
    x = x_ref[...].astype(jnp.float32)
    o_ref[...] = x * jnp.float32(mul) + jnp.float32(add)


def _round_up(x: int, m: int) -> int:
    return ((x + m - 1) // m) * m


_TARGET_BLOCKS = 8     # >= 2x TensorCores (v7x) and enough steps to pipeline.
_MIN_BLOCK_ROWS = 128  # floor so each step moves >= ~320 KB (amortizes ~0.35us).


def _max_block_rows(lane: int) -> int:
    """Generation-aware cap on rows per block (multiple of 32)."""
    try:
        kind = jax.devices()[0].device_kind.lower()
    except Exception:  # pragma: no cover - defensive; default to conservative.
        kind = ""
    big = ("v6" in kind) or ("v7" in kind)
    #   v6e/v7x: 1M elems/block -> 4 MiB f32 out + 1 MiB u8 in, ~10 MiB
    #            double-buffered (< half of v7x's 64 MiB physical VMEM).
    #   v5e/other: 512K elems/block -> ~5 MiB double-buffered (16 MiB default).
    max_elems = (2048 * 512) if big else (1024 * 512)
    return max(32, max_elems // lane)


def _run_tiled(flat, rows: int, lane: int, mul: float, add: float):
    """Run the kernel over a (rows, lane) view of `flat` (no padding)."""
    x2d = flat.reshape(rows, lane)

    if rows <= _MIN_BLOCK_ROWS:
        # Single block equal to the full array dims (always a legal block).
        block_rows = rows
    else:
        block_rows = _round_up(pl.cdiv(rows, _TARGET_BLOCKS), 32)
        block_rows = max(block_rows, _MIN_BLOCK_ROWS)
        block_rows = min(block_rows, _max_block_rows(lane))
        if block_rows >= rows:
            block_rows = rows
    num_blocks = pl.cdiv(rows, block_rows)

    # Explicit scoped-VMEM budget covering the double-buffered tile with
    # headroom; capped at 32 MiB so it is safe on every generation (v7x has
    # only 64 MiB physical VMEM shared by both TensorCores).
    block_bytes = block_rows * lane * (1 + 4)  # u8 in + f32 out
    vmem_limit = min(max(16 << 20, 4 * block_bytes), 32 << 20)

    kernel = functools.partial(_normalization_kernel, mul=mul, add=add)
    out2d = pl.pallas_call(
        kernel,
        out_shape=jax.ShapeDtypeStruct((rows, lane), jnp.float32),
        grid=(num_blocks,),
        in_specs=[pl.BlockSpec((block_rows, lane), lambda i: (i, 0))],
        out_specs=pl.BlockSpec((block_rows, lane), lambda i: (i, 0)),
        compiler_params=pltpu.CompilerParams(
            dimension_semantics=("parallel",),
            vmem_limit_bytes=vmem_limit,
        ),
    )(x2d)
    return out2d.reshape(-1)


def normalization(image, x_min: float, x_max: float):
    """Pallas equivalent of Normalization(x_min, x_max)(image).

    image: any-shape array (typically NCHW uint8). Integer dtypes are scaled by
    1/dtype_max (torchvision ToDtype(scale=True) behaviour for unsigned ints);
    float dtypes are only cast. Returns float32 with the same shape.
    """
    # TODO(synk): tensor-valued (e.g. per-channel) x_min / x_max are not
    # supported; scalars only (matches the common use of this module).
    orig_shape = image.shape
    total = math.prod(orig_shape) if orig_shape else 1

    if total == 0:
        return jnp.zeros(orig_shape, jnp.float32)

    if jnp.issubdtype(image.dtype, jnp.integer):
        # TODO(synk): signed-int ToDtype(scale=True) semantics differ slightly
        # from torchvision; uint8 (the intended case) matches exactly.
        scale_factor = 1.0 / float(jnp.iinfo(image.dtype).max)
    else:
        scale_factor = 1.0  # ToDtype(scale=True) does not rescale float inputs

    # Fold constants: out = x * mul + add  (single multiply-add per element).
    mul = float(scale_factor) * (float(x_max) - float(x_min))
    add = float(x_min)

    flat = image.reshape(-1)  # metadata-only for contiguous row-major input

    # Lane choice: largest of {512, 256, 128} dividing the element count so the
    # 2D reshape is free (no pad, no output slice). Typical NCHW image sizes
    # (e.g. 4*3*224*224, 2*4*16*16) divide 512.
    lane = next((c for c in (512, 256, 128) if total % c == 0), None)

    if lane is not None:
        out_flat = _run_tiled(flat, total // lane, lane, mul, add)
    else:
        # Rare ragged case: kernel handles the 128-aligned body, a tiny
        # (<128 element) plain-JAX epilogue handles the tail.
        body = (total // 128) * 128
        pieces = []
        if body:
            pieces.append(_run_tiled(flat[:body], body // 128, 128, mul, add))
        tail = flat[body:].astype(jnp.float32) * jnp.float32(mul) + jnp.float32(add)
        pieces.append(tail)
        out_flat = jnp.concatenate(pieces) if len(pieces) > 1 else pieces[0]

    return out_flat.reshape(orig_shape)


if __name__ == "__main__":
    key = jax.random.PRNGKey(0)
    x_min, x_max = -1.0, 1.0

    # Small NCHW uint8 image (single-block path).
    x = jax.random.randint(key, (2, 4, 16, 16), 0, 256, dtype=jnp.int32).astype(
        jnp.uint8
    )
    out = jax.block_until_ready(normalization(x, x_min, x_max))
    ref = (x.astype(jnp.float32) / 255.0) * (x_max - x_min) + x_min
    assert out.shape == x.shape
    assert out.dtype == jnp.float32
    assert jnp.allclose(out, ref, atol=1e-5), "mismatch vs reference"

    # Medium image: exercises the multi-block (>= 8 steps, partial last block)
    # tiled path with no padding and no output slice.
    x_big = jax.random.randint(
        jax.random.PRNGKey(0), (4, 3, 224, 224), 0, 256, dtype=jnp.int32
    ).astype(jnp.uint8)
    out_big = jax.block_until_ready(normalization(x_big, x_min, x_max))
    ref_big = (x_big.astype(jnp.float32) / 255.0) * (x_max - x_min) + x_min
    assert out_big.shape == x_big.shape
    assert jnp.allclose(out_big, ref_big, atol=1e-5), "mismatch vs reference (big)"

    print("KERNEL_OK")
</pallas_src>

<mosaic_0001>
module attributes {stable_mosaic.version = 11 : i64} {
  func.func @_normalization_kernel(%arg0: i32, %arg1: memref<4x512xi8, #tpu.memory_space<vmem>>, %arg2: memref<4x512xf32, #tpu.memory_space<vmem>>) attributes {dimension_semantics = [#tpu.dimension_semantics<parallel>], iteration_bounds = array<i64: 1>, scalar_prefetch = 0 : i64, scratch_operands = 0 : i64, tpu.core_type = #tpu.core_type<tc>, window_params = [{transform_indices = @transform_0, window_bounds = array<i64: 4, 512>}, {transform_indices = @transform_1, window_bounds = array<i64: 4, 512>}]} {
    %c0 = arith.constant 0 : index
    %c0_0 = arith.constant 0 : index
    %0 = vector.load %arg1[%c0, %c0_0] : memref<4x512xi8, #tpu.memory_space<vmem>>, vector<4x512xi8>
    %1 = arith.uitofp %0 : vector<4x512xi8> to vector<4x512xf32>
    %cst = arith.constant 0.00784313772 : f32
    %2 = vector.broadcast %cst : f32 to vector<4x512xf32>
    %3 = arith.mulf %1, %2 : vector<4x512xf32>
    %cst_1 = arith.constant -1.000000e+00 : f32
    %4 = vector.broadcast %cst_1 : f32 to vector<4x512xf32>
    %5 = arith.addf %3, %4 : vector<4x512xf32>
    %c0_2 = arith.constant 0 : index
    %c0_3 = arith.constant 0 : index
    %6 = vector.load %arg2[%c0_2, %c0_3] : memref<4x512xf32, #tpu.memory_space<vmem>>, vector<4x512xf32>
    tpu.vector_store %arg2[%c0_2, %c0_3], %5 {strides = array<i32>} : memref<4x512xf32, #tpu.memory_space<vmem>>, vector<4x512xf32>,
    return
  }
  func.func @transform_0(%arg0: i32) -> (i32, i32) {
    %c0_i32 = arith.constant 0 : i32
    %c0_i32_0 = arith.constant 0 : i32
    return %arg0, %c0_i32 : i32, i32
  }
  func.func @transform_1(%arg0: i32) -> (i32, i32) {
    %c0_i32 = arith.constant 0 : i32
    %c0_i32_0 = arith.constant 0 : i32
    return %arg0, %c0_i32 : i32, i32
  }
}

</mosaic_0001>

<llo_original>
// kernel: tpu_custom_call.1
$region0: #{tpu_custom_call.1}
  #allocation0 [shape = 'u32[]', space=smem, size = 0x4, offset = 0x4, fixed_abs, tag = 'smem constant byte address 0x4 - core index']
  #allocation1 [shape = 'u32[144,128]{1,0:T(1,128)}', space=vmem, size = 0x12000, scoped, tag = 'internal scratch']
  %s0 = inlined_call_operand.hbm [shape: u8[4,512], index: 0, kind: input, shape index: {}]
  %s1 = inlined_call_operand.hbm [shape: f32[4,512], index: 1, kind: output, shape index: {}]
  %s2 = sld [smem:[#allocation0]]
  $region18: #{tpu_custom_call.1} parent=0
    _
  %s4 = ssub.s32 1, %s2
  %s5 = scalar_select 0, %s4, %s2
  $region1: #{tpu_custom_call.1} parent=0
    #allocation2 [shape = 'u8[2048]{0}', space=vmem, size = 0x800, scoped, tag = 'input window, operand 0, single buffered']
    #allocation3 [shape = 's32[1]{0}', space=sflag, size = 0x4, scoped, tag = 'scoped memory for tpu_custom_call.1']
    #allocation4 [shape = 's32[1]{0}', space=sflag, size = 0x4, scoped, tag = 'scoped memory for tpu_custom_call.1']
    #allocation5 [shape = 'u8[8192]{0}', space=vmem, size = 0x2000, scoped, tag = 'output window, operand 0, single buffered']
    %6 = vsyncpa [#allocation3], 0
    %7 = vsyncpa [#allocation4], 0
    // Predicated region
    $region2: #{tpu_custom_call.1} parent=1 // pred_check
      _
    $region3: #{tpu_custom_call.1} parent=1 // pred_check_branch
      %9 = sbr.rel (0) target = $region5
    $region4: #{tpu_custom_call.1} parent=1 // pred_region
      %s11 = ssub.s32 64, 64
      %12 = vsyncadd [#allocation3], %s11
      %s14 = sshll.u32 [#allocation2], 4
      %s15 = int_to_ptr.vmem [resolvable:$true] %s14
      %17 = dma.hbm_to_vmem [thread:$0]  %s0, 64, %s15, [#allocation3]
    $region5: #{tpu_custom_call.1} parent=1 // pred_fallthru
      _
    // Predicated region
    $region6: #{tpu_custom_call.1} parent=1 // pred_check
      _
    $region7: #{tpu_custom_call.1} parent=1 // pred_check_branch
      %19 = sbr.rel (0) target = $region9
    $region8: #{tpu_custom_call.1} parent=1 // pred_region
      %20 = dma.done [#allocation3], 64
    $region9: #{tpu_custom_call.1} parent=1 // pred_fallthru
      _
    %v21 = vld [vmem:[#allocation2] sm:$0xf]
    %v22 = vunpack.c.0.s8 %v21
    %v23 = vunpack.c.1.s8 %v21
    %v24 = vand.u32 %v22, 255
    %v25 = vand.u32 %v23, 255
    %v26 = vcvt.s32.f32 %v24
    %v27 = vcvt.s32.f32 %v25
    %v28 = vmul.f32 %v26, 0.007843138
    %v29 = vmul.f32 %v27, 0.007843138
    %v30 = vadd.f32 %v28, -1.0
    %v31 = vadd.f32 %v29, -1.0
    %32 = vst [vmem:[#allocation5] sm:$0xff] %v30
    %33 = vst [vmem:[#allocation5 + $0x8] sm:$0xff] %v31
    // Predicated region
    $region10: #{tpu_custom_call.1} parent=1 // pred_check
      _
    $region11: #{tpu_custom_call.1} parent=1 // pred_check_branch
      %35 = sbr.rel (0) target = $region13
    $region12: #{tpu_custom_call.1} parent=1 // pred_region
      %s37 = ssub.s32 256, 256
      %38 = vsyncadd [#allocation4], %s37
      %s40 = sshll.u32 [#allocation5], 4
      %s41 = int_to_ptr.vmem [resolvable:$true] %s40
      %43 = dma.vmem_to_hbm [thread:$0]  %s41, 256, %s1, [#allocation4]
    $region13: #{tpu_custom_call.1} parent=1 // pred_fallthru
      _
    // Predicated region
    $region14: #{tpu_custom_call.1} parent=1 // pred_check
      _
    $region15: #{tpu_custom_call.1} parent=1 // pred_check_branch
      %45 = sbr.rel (0) target = $region17
    $region16: #{tpu_custom_call.1} parent=1 // pred_region
      %46 = dma.done [#allocation4], 256
    $region17: #{tpu_custom_call.1} parent=1 // pred_fallthru
      _
    %47 = vsyncpa [#allocation3], 1
    %48 = vsyncpa [#allocation4], 1

</llo_original>
